<compile_context>
chip_gen: v6e
topology: v6e:2x2x1
jax: 0.10.0
libtpu: 0.0.40
codegen_flags: <defaults>
</compile_context>

<pallas_src>
import jax
import jax.numpy as jnp
from jax.experimental import pallas as pl
from jax.experimental.pallas import tpu as pltpu


def _bn_prelu_kernel(x_ref, p_ref, o_ref):
    # x_ref: (N, Cb, HW)   p_ref: (Cb, 3) = [gamma | beta | alpha]   o_ref: like x_ref
    n, cb, hw = x_ref.shape
    inv_m = 1.0 / float(n * hw)
    eps = 1e-5  # nn.BatchNorm2d default

    # ---- Pass 1: per-channel batch statistics, streamed over the batch axis.
    # Live f32 temporaries are bounded to one (Cb, HW) slab per iteration.
    def stats_body(i, carry):
        s1, s2 = carry
        xi = x_ref[i].astype(jnp.float32)                    # (Cb, HW)
        s1 = s1 + jnp.sum(xi, axis=1, keepdims=True)         # lane reduce -> (Cb, 1)
        s2 = s2 + jnp.sum(xi * xi, axis=1, keepdims=True)
        return s1, s2

    zero = jnp.zeros((cb, 1), jnp.float32)
    s1, s2 = jax.lax.fori_loop(0, n, stats_body, (zero, zero), unroll=True)

    mean = s1 * inv_m
    # NOTE: single-pass E[x^2] - mean^2 (clamped); switch to a shifted two-pass
    # accumulation if |mean| >> std ever causes accuracy regressions.
    var = jnp.maximum(s2 * inv_m - mean * mean, 0.0)
    inv_std = jax.lax.rsqrt(var + eps)

    params = p_ref[...].astype(jnp.float32)                  # (Cb, 3)
    gamma = params[:, 0:1]
    beta = params[:, 1:2]
    alpha = params[:, 2:3]

    # Fold gamma into the scale: y = x * (gamma * inv_std) + (beta - mean * scale)
    scale = gamma * inv_std                                  # (Cb, 1)
    shift = beta - mean * scale

    # bf16 apply path halves the VPU op width on v6e/v7x (stats stay in f32).
    out_dtype = o_ref.dtype
    apply_dtype = (jnp.bfloat16
                   if jnp.dtype(out_dtype) == jnp.dtype(jnp.bfloat16)
                   else jnp.float32)
    scale_a = scale.astype(apply_dtype)
    shift_a = shift.astype(apply_dtype)
    alpha_a = alpha.astype(apply_dtype)

    # ---- Pass 2: apply BN + PReLU, streaming the (VMEM-resident) batch slices.
    @pl.loop(0, n, unroll=True)
    def _(i):
        xi = x_ref[i].astype(apply_dtype)                    # (Cb, HW)
        y = xi * scale_a + shift_a
        o_ref[i] = jnp.where(y > 0, y, alpha_a * y).astype(out_dtype)


def _vmem_config():
    """Per-generation VMEM limit + block-picker working-set budget (bytes)."""
    cap = None
    try:
        cap = getattr(pltpu.get_tpu_info(), "vmem_capacity_bytes", None)
    except Exception:
        cap = None
    if not cap:
        cap = 64 * 1024 * 1024  # conservative fallback (v7x-sized)
    # v5e/v6e (128 MiB): limit ~102 MiB, picker budget ~77 MiB.
    # v7x      (64 MiB): limit ~51 MiB,  picker budget ~26 MiB (headroom for the
    # double-buffered in/out blocks plus in-kernel f32 temporaries).
    vmem_limit = int(cap * 0.80)
    budget = int(cap * (0.60 if cap >= 96 * 1024 * 1024 else 0.40))
    return vmem_limit, budget


def _pick_channel_block(n, c, hw, itemsize, budget_bytes):
    """Channel block: multiple of the sublane packing, VMEM-budget and
    lane-padding aware, and sized so the channel grid has >= 2 (ideally an
    even number of) steps whenever C allows it."""
    if itemsize >= 4:
        mult = 8
    elif itemsize == 2:
        mult = 16
    else:
        mult = 32
    if c <= mult:
        return c  # full channel dim: allowed by the (8,128) rule and unavoidable

    hw_pad = pl.cdiv(hw, 128) * 128                 # lanes pad to 128
    # Per-channel bytes: in + out block, double-buffered (x4), plus two f32
    # (Cb, HW) temporaries live inside the kernel (one batch slice at a time).
    per_c = n * hw_pad * itemsize * 4 + 2 * hw_pad * 4
    max_cb = max(mult, (budget_bytes // per_c) // mult * mult)

    # >= 2 grid steps (v7x has 2 TensorCores on the 'parallel' axis, and >= 2
    # steps lets the DMA of step i+1 overlap compute of step i); prefer even.
    steps = max(2, pl.cdiv(c, max_cb))
    if steps % 2 == 1 and pl.cdiv(c, steps + 1) >= mult:
        steps += 1
    cb = pl.cdiv(pl.cdiv(c, steps), mult) * mult    # round up to sublane multiple
    return min(cb, max_cb)


def bn_prelu(x_nchw, gamma, beta, alpha):
    """x_nchw: (N, C, H, W); gamma/beta/alpha: (C,). Training-mode BN + PReLU."""
    n, c, h, w = x_nchw.shape
    hw = h * w

    x3d = x_nchw.reshape(n, c, hw)                  # copy-free view, spatial on lanes
    # Pack the three per-channel parameters into one tiny operand -> a single
    # DMA descriptor per grid step instead of three.
    params = jnp.stack([gamma.astype(jnp.float32),
                        beta.astype(jnp.float32),
                        alpha.astype(jnp.float32)], axis=1)   # (C, 3)

    vmem_limit, budget = _vmem_config()
    cb = _pick_channel_block(n, c, hw, jnp.dtype(x_nchw.dtype).itemsize, budget)
    grid = (pl.cdiv(c, cb),)

    x_spec = pl.BlockSpec((n, cb, hw), lambda i: (0, i, 0))
    p_spec = pl.BlockSpec((cb, 3), lambda i: (i, 0))

    y3d = pl.pallas_call(
        _bn_prelu_kernel,
        out_shape=jax.ShapeDtypeStruct((n, c, hw), x_nchw.dtype),
        grid=grid,
        in_specs=[x_spec, p_spec],
        out_specs=pl.BlockSpec((n, cb, hw), lambda i: (0, i, 0)),
        compiler_params=pltpu.CompilerParams(
            dimension_semantics=("parallel",),
            vmem_limit_bytes=vmem_limit,
        ),
    )(x3d, params)

    return y3d.reshape(n, c, h, w)


if __name__ == "__main__":
    key = jax.random.PRNGKey(0)
    N, C, H, W = 2, 4, 16, 16

    x = jax.random.normal(key, (N, C, H, W), dtype=jnp.float32)

    # Deterministic, non-trivial parameter init (shapes from __init__: all (C,)).
    gamma = jnp.linspace(0.5, 1.5, C, dtype=jnp.float32)   # bn.weight
    beta = jnp.linspace(-0.2, 0.2, C, dtype=jnp.float32)   # bn.bias
    alpha = jnp.full((C,), 0.25, dtype=jnp.float32)        # prelu.weight (PyTorch default)

    out = bn_prelu(x, gamma, beta, alpha)
    jax.block_until_ready(out)

    # Pure-JAX reference (training-mode BN with biased batch variance + PReLU).
    mean = jnp.mean(x, axis=(0, 2, 3), keepdims=True)
    var = jnp.var(x, axis=(0, 2, 3), keepdims=True)
    xh = (x - mean) / jnp.sqrt(var + 1e-5)
    y = xh * gamma.reshape(1, C, 1, 1) + beta.reshape(1, C, 1, 1)
    ref = jnp.where(y > 0, y, alpha.reshape(1, C, 1, 1) * y)
    assert jnp.allclose(out, ref, atol=1e-5, rtol=1e-5), float(jnp.max(jnp.abs(out - ref)))

    print("KERNEL_OK")
</pallas_src>

<mosaic_0001>
module attributes {stable_mosaic.version = 11 : i64} {
  func.func @_bn_prelu_kernel(%arg0: i32, %arg1: memref<2x4x256xf32, #tpu.memory_space<vmem>>, %arg2: memref<4x3xf32, #tpu.memory_space<vmem>>, %arg3: memref<2x4x256xf32, #tpu.memory_space<vmem>>) attributes {dimension_semantics = [#tpu.dimension_semantics<parallel>], iteration_bounds = array<i64: 1>, scalar_prefetch = 0 : i64, scratch_operands = 0 : i64, tpu.core_type = #tpu.core_type<tc>, window_params = [{transform_indices = @transform_0, window_bounds = array<i64: 2, 4, 256>}, {transform_indices = @transform_1, window_bounds = array<i64: 4, 3>}, {transform_indices = @transform_2, window_bounds = array<i64: 2, 4, 256>}]} {
    %cst = arith.constant 0.000000e+00 : f32
    %0 = vector.broadcast %cst : f32 to vector<4x1xf32>
    %c0_i32 = arith.constant 0 : i32
    %1 = arith.index_cast %c0_i32 : i32 to index
    %c0 = arith.constant 0 : index
    %c0_0 = arith.constant 0 : index
    %2 = vector.load %arg1[%1, %c0, %c0_0] : memref<2x4x256xf32, #tpu.memory_space<vmem>>, vector<1x4x256xf32>
    %3 = vector.shape_cast %2 : vector<1x4x256xf32> to vector<4x256xf32>
    %cst_1 = arith.constant dense<0.000000e+00> : vector<4xf32>
    %4 = vector.multi_reduction <add>, %3, %cst_1 [1] : vector<4x256xf32> to vector<4xf32>
    %5 = vector.shape_cast %4 : vector<4xf32> to vector<4x1xf32>
    %6 = arith.addf %0, %5 : vector<4x1xf32>
    %7 = arith.mulf %3, %3 : vector<4x256xf32>
    %cst_2 = arith.constant dense<0.000000e+00> : vector<4xf32>
    %8 = vector.multi_reduction <add>, %7, %cst_2 [1] : vector<4x256xf32> to vector<4xf32>
    %9 = vector.shape_cast %8 : vector<4xf32> to vector<4x1xf32>
    %10 = arith.addf %0, %9 : vector<4x1xf32>
    %c1_i32 = arith.constant 1 : i32
    %11 = arith.index_cast %c1_i32 : i32 to index
    %c0_3 = arith.constant 0 : index
    %c0_4 = arith.constant 0 : index
    %12 = vector.load %arg1[%11, %c0_3, %c0_4] : memref<2x4x256xf32, #tpu.memory_space<vmem>>, vector<1x4x256xf32>
    %13 = vector.shape_cast %12 : vector<1x4x256xf32> to vector<4x256xf32>
    %cst_5 = arith.constant dense<0.000000e+00> : vector<4xf32>
    %14 = vector.multi_reduction <add>, %13, %cst_5 [1] : vector<4x256xf32> to vector<4xf32>
    %15 = vector.shape_cast %14 : vector<4xf32> to vector<4x1xf32>
    %16 = arith.addf %6, %15 : vector<4x1xf32>
    %17 = arith.mulf %13, %13 : vector<4x256xf32>
    %cst_6 = arith.constant dense<0.000000e+00> : vector<4xf32>
    %18 = vector.multi_reduction <add>, %17, %cst_6 [1] : vector<4x256xf32> to vector<4xf32>
    %19 = vector.shape_cast %18 : vector<4xf32> to vector<4x1xf32>
    %20 = arith.addf %10, %19 : vector<4x1xf32>
    %c2_i32 = arith.constant 2 : i32
    %cst_7 = arith.constant 0.001953125 : f32
    %21 = vector.broadcast %cst_7 : f32 to vector<4x1xf32>
    %22 = arith.mulf %16, %21 : vector<4x1xf32>
    %cst_8 = arith.constant 0.001953125 : f32
    %23 = vector.broadcast %cst_8 : f32 to vector<4x1xf32>
    %24 = arith.mulf %20, %23 : vector<4x1xf32>
    %25 = arith.mulf %22, %22 : vector<4x1xf32>
    %26 = arith.subf %24, %25 : vector<4x1xf32>
    %cst_9 = arith.constant 0.000000e+00 : f32
    %27 = vector.broadcast %cst_9 : f32 to vector<4x1xf32>
    %28 = arith.maximumf %26, %27 : vector<4x1xf32>
    %cst_10 = arith.constant 9.99999974E-6 : f32
    %29 = vector.broadcast %cst_10 : f32 to vector<4x1xf32>
    %30 = arith.addf %28, %29 : vector<4x1xf32>
    %31 = math.rsqrt %30 : vector<4x1xf32>
    %c0_11 = arith.constant 0 : index
    %c0_12 = arith.constant 0 : index
    %32 = vector.load %arg2[%c0_11, %c0_12] : memref<4x3xf32, #tpu.memory_space<vmem>>, vector<4x3xf32>
    %33 = vector.extract_strided_slice %32 {offsets = [0, 0], sizes = [4, 1], strides = [1, 1]} : vector<4x3xf32> to vector<4x1xf32>
    %34 = vector.extract_strided_slice %32 {offsets = [0, 1], sizes = [4, 1], strides = [1, 1]} : vector<4x3xf32> to vector<4x1xf32>
    %35 = vector.extract_strided_slice %32 {offsets = [0, 2], sizes = [4, 1], strides = [1, 1]} : vector<4x3xf32> to vector<4x1xf32>
    %36 = arith.mulf %33, %31 : vector<4x1xf32>
    %37 = arith.mulf %22, %36 : vector<4x1xf32>
    %38 = arith.subf %34, %37 : vector<4x1xf32>
    %c0_i32_13 = arith.constant 0 : i32
    %c1_i32_14 = arith.constant 1 : i32
    %39 = arith.muli %c0_i32_13, %c1_i32_14 : i32
    %c0_i32_15 = arith.constant 0 : i32
    %40 = arith.addi %c0_i32_15, %39 : i32
    %41 = arith.index_cast %40 : i32 to index
    %c0_16 = arith.constant 0 : index
    %c0_17 = arith.constant 0 : index
    %42 = vector.load %arg1[%41, %c0_16, %c0_17] : memref<2x4x256xf32, #tpu.memory_space<vmem>>, vector<1x4x256xf32>
    %43 = vector.shape_cast %42 : vector<1x4x256xf32> to vector<4x256xf32>
    %44 = vector.broadcast %36 : vector<4x1xf32> to vector<4x256xf32>
    %45 = arith.mulf %43, %44 : vector<4x256xf32>
    %46 = vector.broadcast %38 : vector<4x1xf32> to vector<4x256xf32>
    %47 = arith.addf %45, %46 : vector<4x256xf32>
    %cst_18 = arith.constant 0.000000e+00 : f32
    %48 = vector.broadcast %cst_18 : f32 to vector<4x256xf32>
    %49 = arith.cmpf ogt, %47, %48 : vector<4x256xf32>
    %50 = vector.broadcast %35 : vector<4x1xf32> to vector<4x256xf32>
    %51 = arith.mulf %50, %47 : vector<4x256xf32>
    %52 = arith.select %49, %47, %51 : vector<4x256xi1>, vector<4x256xf32>
    %53 = arith.index_cast %40 : i32 to index
    %c0_19 = arith.constant 0 : index
    %c0_20 = arith.constant 0 : index
    %54 = vector.load %arg3[%53, %c0_19, %c0_20] : memref<2x4x256xf32, #tpu.memory_space<vmem>>, vector<1x4x256xf32>
    %55 = vector.shape_cast %54 : vector<1x4x256xf32> to vector<4x256xf32>
    %56 = vector.shape_cast %52 : vector<4x256xf32> to vector<1x4x256xf32>
    tpu.vector_store %arg3[%53, %c0_19, %c0_20], %56 {strides = array<i32>} : memref<2x4x256xf32, #tpu.memory_space<vmem>>, vector<1x4x256xf32>,
    %c1_i32_21 = arith.constant 1 : i32
    %c1_i32_22 = arith.constant 1 : i32
    %57 = arith.muli %c1_i32_21, %c1_i32_22 : i32
    %c0_i32_23 = arith.constant 0 : i32
    %58 = arith.addi %c0_i32_23, %57 : i32
    %59 = arith.index_cast %58 : i32 to index
    %c0_24 = arith.constant 0 : index
    %c0_25 = arith.constant 0 : index
    %60 = vector.load %arg1[%59, %c0_24, %c0_25] : memref<2x4x256xf32, #tpu.memory_space<vmem>>, vector<1x4x256xf32>
    %61 = vector.shape_cast %60 : vector<1x4x256xf32> to vector<4x256xf32>
    %62 = vector.broadcast %36 : vector<4x1xf32> to vector<4x256xf32>
    %63 = arith.mulf %61, %62 : vector<4x256xf32>
    %64 = vector.broadcast %38 : vector<4x1xf32> to vector<4x256xf32>
    %65 = arith.addf %63, %64 : vector<4x256xf32>
    %cst_26 = arith.constant 0.000000e+00 : f32
    %66 = vector.broadcast %cst_26 : f32 to vector<4x256xf32>
    %67 = arith.cmpf ogt, %65, %66 : vector<4x256xf32>
    %68 = vector.broadcast %35 : vector<4x1xf32> to vector<4x256xf32>
    %69 = arith.mulf %68, %65 : vector<4x256xf32>
    %70 = arith.select %67, %65, %69 : vector<4x256xi1>, vector<4x256xf32>
    %71 = arith.index_cast %58 : i32 to index
    %c0_27 = arith.constant 0 : index
    %c0_28 = arith.constant 0 : index
    %72 = vector.load %arg3[%71, %c0_27, %c0_28] : memref<2x4x256xf32, #tpu.memory_space<vmem>>, vector<1x4x256xf32>
    %73 = vector.shape_cast %72 : vector<1x4x256xf32> to vector<4x256xf32>
    %74 = vector.shape_cast %70 : vector<4x256xf32> to vector<1x4x256xf32>
    tpu.vector_store %arg3[%71, %c0_27, %c0_28], %74 {strides = array<i32>} : memref<2x4x256xf32, #tpu.memory_space<vmem>>, vector<1x4x256xf32>,
    %c2_i32_29 = arith.constant 2 : i32
    return
  }
  func.func @transform_0(%arg0: i32) -> (i32, i32, i32) {
    %c0_i32 = arith.constant 0 : i32
    %c0_i32_0 = arith.constant 0 : i32
    %c0_i32_1 = arith.constant 0 : i32
    return %c0_i32, %arg0, %c0_i32_0 : i32, i32, i32
  }
  func.func @transform_1(%arg0: i32) -> (i32, i32) {
    %c0_i32 = arith.constant 0 : i32
    %c0_i32_0 = arith.constant 0 : i32
    return %arg0, %c0_i32 : i32, i32
  }
  func.func @transform_2(%arg0: i32) -> (i32, i32, i32) {
    %c0_i32 = arith.constant 0 : i32
    %c0_i32_0 = arith.constant 0 : i32
    %c0_i32_1 = arith.constant 0 : i32
    return %c0_i32, %arg0, %c0_i32_0 : i32, i32, i32
  }
}

</mosaic_0001>

<llo_original>
// kernel: tpu_custom_call.1
$region0: #{tpu_custom_call.1}
  #allocation0 [shape = 'u32[]', space=smem, size = 0x4, offset = 0x4, fixed_abs, tag = 'smem constant byte address 0x4 - core index']
  #allocation1 [shape = 'u32[144,128]{1,0:T(1,128)}', space=vmem, size = 0x12000, scoped, tag = 'internal scratch']
  %s0 = inlined_call_operand.hbm [shape: f32[2,4,256], index: 0, kind: input, shape index: {}]
  %s1 = inlined_call_operand.hbm [shape: f32[4,3], index: 1, kind: input, shape index: {}]
  %s2 = inlined_call_operand.hbm [shape: f32[2,4,256], index: 2, kind: output, shape index: {}]
  %s3 = sld [smem:[#allocation0]]
  $region26: #{tpu_custom_call.1} parent=0
    _
  %s5 = ssub.s32 1, %s3
  %s6 = scalar_select 0, %s5, %s3
  $region1: #{tpu_custom_call.1} parent=0
    #allocation2 [shape = 'u8[8192]{0}', space=vmem, size = 0x2000, scoped, tag = 'input window, operand 0, single buffered']
    #allocation3 [shape = 's32[1]{0}', space=sflag, size = 0x4, scoped, tag = 'scoped memory for tpu_custom_call.1']
    #allocation4 [shape = 's32[1]{0}', space=sflag, size = 0x4, scoped, tag = 'scoped memory for tpu_custom_call.1']
    #allocation5 [shape = 'u8[2048]{0}', space=vmem, size = 0x800, scoped, tag = 'input window, operand 1, single buffered']
    #allocation6 [shape = 's32[1]{0}', space=sflag, size = 0x4, scoped, tag = 'scoped memory for tpu_custom_call.1']
    #allocation7 [shape = 'u8[8192]{0}', space=vmem, size = 0x2000, scoped, tag = 'output window, operand 0, single buffered']
    %7 = vsyncpa [#allocation3], 0
    %8 = vsyncpa [#allocation6], 0
    %9 = vsyncpa [#allocation4], 0
    // Predicated region
    $region2: #{tpu_custom_call.1} parent=1 // pred_check
      _
    $region3: #{tpu_custom_call.1} parent=1 // pred_check_branch
      %11 = sbr.rel (0) target = $region5
    $region4: #{tpu_custom_call.1} parent=1 // pred_region
      %s13 = ssub.s32 256, 256
      %14 = vsyncadd [#allocation3], %s13
      %s15 = sshll.u32 [#allocation2], 4
      %s16 = int_to_ptr.vmem [resolvable:$true] %s15
      %21 = dma.hbm_to_vmem [thread:$0]  %s0, 256, %s16, [#allocation3], 128, 128, 8
    $region5: #{tpu_custom_call.1} parent=1 // pred_fallthru
      _
    // Predicated region
    $region6: #{tpu_custom_call.1} parent=1 // pred_check
      _
    $region7: #{tpu_custom_call.1} parent=1 // pred_check_branch
      %23 = sbr.rel (0) target = $region9
    $region8: #{tpu_custom_call.1} parent=1 // pred_region
      %s25 = ssub.s32 64, 64
      %26 = vsyncadd [#allocation6], %s25
      %s28 = sshll.u32 [#allocation5], 4
      %s29 = int_to_ptr.vmem [resolvable:$true] %s28
      %31 = dma.hbm_to_vmem [thread:$0]  %s1, 64, %s29, [#allocation6]
    $region9: #{tpu_custom_call.1} parent=1 // pred_fallthru
      _
    // Predicated region
    $region10: #{tpu_custom_call.1} parent=1 // pred_check
      _
    $region11: #{tpu_custom_call.1} parent=1 // pred_check_branch
      %33 = sbr.rel (0) target = $region13
    $region12: #{tpu_custom_call.1} parent=1 // pred_region
      %34 = dma.done [#allocation3], 256
    $region13: #{tpu_custom_call.1} parent=1 // pred_fallthru
      _
    // Predicated region
    $region14: #{tpu_custom_call.1} parent=1 // pred_check
      _
    $region15: #{tpu_custom_call.1} parent=1 // pred_check_branch
      %36 = sbr.rel (0) target = $region17
    $region16: #{tpu_custom_call.1} parent=1 // pred_region
      %37 = dma.done [#allocation6], 64
    $region17: #{tpu_custom_call.1} parent=1 // pred_fallthru
      _
    %v38 = vld [vmem:[#allocation2] sm:$0xff]
    %v40 = vcombine.high %v38, %v38
    %vm42 = vcmask 1043456
    %v43 = vsel %vm42, %v38, 0.0
    %v44 = vsel %vm42, %v40, 0.0
    %v45 = vadd.f32 %v43, %v44
    %46 = vadd.xlane.f32.xlu0 %v45
    %v47 = vpop.xlane.xlu0 %46
    %v48 = vadd.f32 %v47, 0.0
    %v49 = vmul.f32 %v38, %v38
    %v51 = vcombine.high %v49, %v49
    %v53 = vsel %vm42, %v49, 0.0
    %v54 = vsel %vm42, %v51, 0.0
    %v55 = vadd.f32 %v53, %v54
    %56 = vadd.xlane.f32.xlu0 %v55
    %v57 = vpop.xlane.xlu0 %56
    %v58 = vadd.f32 %v57, 0.0
    %s59 = scalar_lea.vmem [#allocation2], 8
    %v60 = vld [vmem:[%s59] sm:$0xff]
    %v62 = vcombine.high %v60, %v60
    %v64 = vsel %vm42, %v60, 0.0
    %v65 = vsel %vm42, %v62, 0.0
    %v66 = vadd.f32 %v64, %v65
    %67 = vadd.xlane.f32.xlu0 %v66
    %v68 = vpop.xlane.xlu0 %67
    %v69 = vadd.f32 %v48, %v68
    %v70 = vmul.f32 %v60, %v60
    %v72 = vcombine.high %v70, %v70
    %v74 = vsel %vm42, %v70, 0.0
    %v75 = vsel %vm42, %v72, 0.0
    %v76 = vadd.f32 %v74, %v75
    %77 = vadd.xlane.f32.xlu0 %v76
    %v78 = vpop.xlane.xlu0 %77
    %v79 = vadd.f32 %v58, %v78
    %v80 = vmul.f32 %v69, 0.001953125
    %v81 = vmul.f32 %v79, 0.001953125
    %v82 = vmul.f32 %v80, %v80
    %v83 = vsub.f32 %v81, %v82
    %v84 = vmax.f32 %v83, 0.0
    %v85 = vadd.f32 %v84, 1e-05
    %v86 = vrsqrt.pop %v85
    %v87 = vld [vmem:[#allocation5] sm:$0xf]
    %v88 = vmul.f32 %v87, %v86
    %v89 = vmul.f32 %v80, %v88
    %91 = vrot.lane.b32.xlu0 %v89, 1
    %v92 = vpop.permute.xlu0 %91
    %v94 = vsub.f32 %v87, %v92
    %96 = vset.pattern.permute.xlu0 0
    %97 = vperm.xlu0 %96, %v88
    %v98 = vpop.permute.xlu0 %97
    %v100 = vunpack.c.l.s4 839922192
    %v101 = vunpack.c.0.s8 %v100
    %v102 = vlaneseq
    %v103 = vshrl.u32 %v102, 7
    %v104 = vsub.s32 %v101, %v103
    %v105 = vrot.slane %v98, %v104
    %v107 = vmul.f32 %v38, %v105
    %109 = vset.pattern.permute.xlu0 1
    %110 = vperm.xlu0 %109, %v94
    %v111 = vpop.permute.xlu0 %110
    %v113 = vunpack.c.l.s4 839922192
    %v114 = vunpack.c.0.s8 %v113
    %v115 = vlaneseq
    %v116 = vshrl.u32 %v115, 7
    %v117 = vsub.s32 %v114, %v116
    %v118 = vrot.slane %v111, %v117
    %v120 = vadd.f32 %v107, %v118
    %vm121 = vcmp.gt.f32.partialorder %v120, 0.0
    %123 = vset.pattern.permute.xlu0 2
    %124 = vperm.xlu0 %123, %v87
    %v125 = vpop.permute.xlu0 %124
    %v128 = vcombine.high %v120, %v120
    %v130 = vmul.f32 %v125, %v120
    %v131 = vmul.f32 %v125, %v128
    %v134 = vcombine.low %v130, %v131
    %v136 = vsel %vm121, %v120, %v134
    %137 = vst [vmem:[#allocation7] sm:$0xff] %v136
    %v138 = vld [vmem:[%s59] sm:$0xff]
    %v139 = vmul.f32 %v138, %v105
    %v140 = vadd.f32 %v139, %v118
    %vm141 = vcmp.gt.f32.partialorder %v140, 0.0
    %v143 = vcombine.high %v140, %v140
    %v145 = vmul.f32 %v125, %v140
    %v146 = vmul.f32 %v125, %v143
    %v149 = vcombine.low %v145, %v146
    %v151 = vsel %vm141, %v140, %v149
    %s152 = scalar_lea.vmem [#allocation7], 8
    %153 = vst [vmem:[%s152] sm:$0xff] %v151
    // Predicated region
    $region18: #{tpu_custom_call.1} parent=1 // pred_check
      _
    $region19: #{tpu_custom_call.1} parent=1 // pred_check_branch
      %155 = sbr.rel (0) target = $region21
    $region20: #{tpu_custom_call.1} parent=1 // pred_region
      %s157 = ssub.s32 256, 256
      %158 = vsyncadd [#allocation4], %s157
      %s159 = sshll.u32 [#allocation7], 4
      %s160 = int_to_ptr.vmem [resolvable:$true] %s159
      %165 = dma.vmem_to_hbm [thread:$0]  %s160, 256, %s2, [#allocation4], 128, 128, 8
    $region21: #{tpu_custom_call.1} parent=1 // pred_fallthru
      _
    // Predicated region
    $region22: #{tpu_custom_call.1} parent=1 // pred_check
      _
    $region23: #{tpu_custom_call.1} parent=1 // pred_check_branch
      %167 = sbr.rel (0) target = $region25
    $region24: #{tpu_custom_call.1} parent=1 // pred_region
      %168 = dma.done [#allocation4], 256
    $region25: #{tpu_custom_call.1} parent=1 // pred_fallthru
      _
    %169 = vsyncpa [#allocation3], 1
    %170 = vsyncpa [#allocation6], 1
    %171 = vsyncpa [#allocation4], 1

</llo_original>
